<compile_context>
chip_gen: v6e
topology: v6e:2x2x1
jax: 0.10.0
libtpu: 0.0.40
codegen_flags: <defaults>
</compile_context>

<pallas_src>
import jax
import jax.numpy as jnp
from jax.experimental import pallas as pl
from jax.experimental.pallas import tpu as pltpu


def _allc2_kernel(epi):
    """Kernel body with epi baked in as a compile-time constant.

    epi is a non-trainable buffer in the PyTorch module; changing it at runtime
    triggers a retrace/recompile, which is acceptable.
    """

    def kernel(x_ref, a_like_ref, b_like_ref, o_ref):
        a_like = a_like_ref[...].astype(jnp.float32)    # (1, tn) resident row
        b_like = b_like_ref[...].astype(jnp.float32)    # (1, tn) resident row
        a = a_like * a_like + epi                       # per-feature scale (> 0)
        b = b_like * b_like + 0.5                       # per-feature shift (>= 0.5)

        y = a * jnp.abs(x_ref[...].astype(jnp.float32)) + b    # (tb, tn), y >= 0.5
        # relu(y) is a no-op (y >= 0.5) and 1 - relu(1 - y) == min(y, 1): exact.
        y = jnp.minimum(y, 1.0)
        o_ref[...] = y.astype(o_ref.dtype)

    return kernel


def _sublane_min(dtype):
    # f32 -> 8 sublanes, bf16 -> 16, int8/fp8 -> 32.
    itemsize = jnp.dtype(dtype).itemsize
    return max(8, 32 // itemsize)


def _choose_tiles(B, N, dtype, *, target_tile_bytes=4 << 20, max_lane_tile=2048):
    """Pick (tb, tn) so each x/out tile is ~target_tile_bytes and lane-dense.

    Constraints honored:
      * last block dim is a multiple of 128 OR equal to the full N,
      * second-to-last block dim is a multiple of the dtype sublane minimum OR
        equal to the full B.
    Ragged final blocks are allowed (grid uses pl.cdiv).
    """
    itemsize = jnp.dtype(dtype).itemsize
    sub = _sublane_min(dtype)

    # Feature (lane) tile: full N when it fits, else a large multiple of 128.
    if N <= max_lane_tile:
        tn = N                      # full array dim -> always legal
    else:
        tn = max_lane_tile          # multiple of 128; ragged tail handled by cdiv

    # Row (sublane) tile: aim for ~target_tile_bytes per buffer.
    rows = max(sub, target_tile_bytes // max(1, tn * itemsize))
    rows = (rows // sub) * sub
    if rows >= B:
        tb = B                      # full array dim -> always legal
    else:
        tb = max(sub, rows)
    return tb, tn


def allc2_forward(x, a_like, b_like, *, epi=1e-8):
    """ALLC2 forward.  x: (B, N); a_like, b_like: (N,)."""
    B, N = x.shape
    assert a_like.shape == (N,) and b_like.shape == (N,)

    itemsize = jnp.dtype(x.dtype).itemsize
    tb, tn = _choose_tiles(B, N, x.dtype)

    a2 = a_like.reshape(1, N)
    b2 = b_like.reshape(1, N)

    grid = (pl.cdiv(B, tb), pl.cdiv(N, tn))

    # VMEM budget: double-buffered x + out tiles, plus the small (1, tn) a/b rows.
    # ~4 MiB tiles => ~17 MiB total; give 2x headroom, clamp to stay well inside
    # v7x's 64 MiB physical VMEM while overriding v5e's 16 MiB default scope.
    vmem_need = 4 * tb * tn * itemsize + 8 * tn * itemsize
    vmem_limit_bytes = int(min(max(2 * vmem_need, 32 << 20), 48 << 20))

    cost = pl.CostEstimate(
        flops=5 * B * N,                                # abs, mul, add, min + a/b
        transcendentals=0,
        bytes_accessed=(2 * B * N + 2 * N) * itemsize,  # x in + y out + a/b rows
    )

    return pl.pallas_call(
        _allc2_kernel(float(epi)),
        out_shape=jax.ShapeDtypeStruct((B, N), x.dtype),
        grid_spec=pltpu.PrefetchScalarGridSpec(
            num_scalar_prefetch=0,
            grid=grid,
            in_specs=[
                pl.BlockSpec((tb, tn), lambda i, j: (i, j)),   # x tile
                pl.BlockSpec((1, tn), lambda i, j: (0, j)),    # a_like row (per feature tile)
                pl.BlockSpec((1, tn), lambda i, j: (0, j)),    # b_like row
            ],
            out_specs=pl.BlockSpec((tb, tn), lambda i, j: (i, j)),
        ),
        compiler_params=pltpu.CompilerParams(
            dimension_semantics=("parallel", "parallel"),
            vmem_limit_bytes=vmem_limit_bytes,
        ),
        cost_estimate=cost,
    )(x, a2, b2)


def make_allc2_params(size, *, shrink_factor=1.0, shape_factor=1.5, epi=1e-8):
    """Deterministic parameter init matching ALLC2.__init__."""
    a_like_val = float(jnp.sqrt(jnp.float32(shrink_factor - epi)))
    b_like_val = float(jnp.sqrt(jnp.float32(shape_factor - 0.5)))
    a_like = jnp.full((size,), a_like_val, dtype=jnp.float32)
    b_like = jnp.full((size,), b_like_val, dtype=jnp.float32)
    return a_like, b_like


def allc2_reference(x, a_like, b_like, *, epi=1e-8):
    """Pure-JAX reference mirroring the PyTorch forward exactly."""
    a = a_like * a_like + epi
    b = b_like * b_like + 0.5
    y = jnp.abs(x)
    y = a * y + b
    y = jnp.maximum(y, 0.0)
    y = 1.0 - jnp.maximum(1.0 - y, 0.0)
    return y


if __name__ == "__main__":
    key = jax.random.PRNGKey(0)

    # Primary small test: batch=16, size=256.
    B, N = 16, 256
    x = jax.random.normal(key, (B, N), dtype=jnp.float32) * 2.0
    a_like, b_like = make_allc2_params(N)

    out = jax.block_until_ready(allc2_forward(x, a_like, b_like))
    ref = allc2_reference(x, a_like, b_like)
    assert out.shape == (B, N)
    assert jnp.allclose(out, ref, atol=1e-6, rtol=1e-6), "mismatch vs reference"

    # Ragged / odd-shape test (B not multiple of 8, N not multiple of 128):
    # exercises full-dim block shapes and cdiv grids.
    B2, N2 = 10, 96
    x2 = jax.random.normal(jax.random.PRNGKey(1), (B2, N2), dtype=jnp.float32) * 3.0
    a_like2, b_like2 = make_allc2_params(N2, shrink_factor=2.0, shape_factor=0.75)
    out2 = jax.block_until_ready(
        allc2_forward(x2, a_like2, b_like2)
    )
    ref2 = allc2_reference(x2, a_like2, b_like2)
    assert jnp.allclose(out2, ref2, atol=1e-6, rtol=1e-6), "mismatch vs reference (ragged)"

    print("KERNEL_OK")
</pallas_src>

<mosaic_0001>
module attributes {stable_mosaic.version = 11 : i64} {
  func.func @kernel(%arg0: i32, %arg1: i32, %arg2: memref<16x256xf32, #tpu.memory_space<vmem>>, %arg3: memref<1x256xf32, #tpu.memory_space<vmem>>, %arg4: memref<1x256xf32, #tpu.memory_space<vmem>>, %arg5: memref<16x256xf32, #tpu.memory_space<vmem>>) attributes {dimension_semantics = [#tpu.dimension_semantics<parallel>, #tpu.dimension_semantics<parallel>], iteration_bounds = array<i64: 1, 1>, scalar_prefetch = 0 : i64, scratch_operands = 0 : i64, tpu.core_type = #tpu.core_type<tc>, window_params = [{transform_indices = @transform_0, window_bounds = array<i64: 16, 256>}, {transform_indices = @transform_1, window_bounds = array<i64: 1, 256>}, {transform_indices = @transform_2, window_bounds = array<i64: 1, 256>}, {transform_indices = @transform_3, window_bounds = array<i64: 16, 256>}]} {
    %c0 = arith.constant 0 : index
    %c0_0 = arith.constant 0 : index
    %0 = vector.load %arg3[%c0, %c0_0] : memref<1x256xf32, #tpu.memory_space<vmem>>, vector<1x256xf32>
    %c0_1 = arith.constant 0 : index
    %c0_2 = arith.constant 0 : index
    %1 = vector.load %arg4[%c0_1, %c0_2] : memref<1x256xf32, #tpu.memory_space<vmem>>, vector<1x256xf32>
    %2 = arith.mulf %0, %0 : vector<1x256xf32>
    %cst = arith.constant 9.99999993E-9 : f32
    %3 = vector.broadcast %cst : f32 to vector<1x256xf32>
    %4 = arith.addf %2, %3 : vector<1x256xf32>
    %5 = arith.mulf %1, %1 : vector<1x256xf32>
    %cst_3 = arith.constant 5.000000e-01 : f32
    %6 = vector.broadcast %cst_3 : f32 to vector<1x256xf32>
    %7 = arith.addf %5, %6 : vector<1x256xf32>
    %c0_4 = arith.constant 0 : index
    %c0_5 = arith.constant 0 : index
    %8 = vector.load %arg2[%c0_4, %c0_5] : memref<16x256xf32, #tpu.memory_space<vmem>>, vector<16x256xf32>
    %9 = math.absf %8 : vector<16x256xf32>
    %10 = vector.broadcast %4 : vector<1x256xf32> to vector<16x256xf32>
    %11 = arith.mulf %10, %9 : vector<16x256xf32>
    %12 = vector.broadcast %7 : vector<1x256xf32> to vector<16x256xf32>
    %13 = arith.addf %11, %12 : vector<16x256xf32>
    %cst_6 = arith.constant 1.000000e+00 : f32
    %14 = vector.broadcast %cst_6 : f32 to vector<16x256xf32>
    %15 = arith.minimumf %13, %14 : vector<16x256xf32>
    %c0_7 = arith.constant 0 : index
    %c0_8 = arith.constant 0 : index
    %16 = vector.load %arg5[%c0_7, %c0_8] : memref<16x256xf32, #tpu.memory_space<vmem>>, vector<16x256xf32>
    tpu.vector_store %arg5[%c0_7, %c0_8], %15 {strides = array<i32>} : memref<16x256xf32, #tpu.memory_space<vmem>>, vector<16x256xf32>,
    return
  }
  func.func @transform_0(%arg0: i32, %arg1: i32) -> (i32, i32) {
    %c0_i32 = arith.constant 0 : i32
    return %arg0, %arg1 : i32, i32
  }
  func.func @transform_1(%arg0: i32, %arg1: i32) -> (i32, i32) {
    %c0_i32 = arith.constant 0 : i32
    %c0_i32_0 = arith.constant 0 : i32
    return %c0_i32, %arg1 : i32, i32
  }
  func.func @transform_2(%arg0: i32, %arg1: i32) -> (i32, i32) {
    %c0_i32 = arith.constant 0 : i32
    %c0_i32_0 = arith.constant 0 : i32
    return %c0_i32, %arg1 : i32, i32
  }
  func.func @transform_3(%arg0: i32, %arg1: i32) -> (i32, i32) {
    %c0_i32 = arith.constant 0 : i32
    return %arg0, %arg1 : i32, i32
  }
}

</mosaic_0001>

<llo_original>
// kernel: tpu_custom_call.1
$region0: #{tpu_custom_call.1}
  #allocation0 [shape = 'u32[]', space=smem, size = 0x4, offset = 0x4, fixed_abs, tag = 'smem constant byte address 0x4 - core index']
  #allocation1 [shape = 'u32[144,128]{1,0:T(1,128)}', space=vmem, size = 0x12000, scoped, tag = 'internal scratch']
  %s0 = inlined_call_operand.hbm [shape: f32[16,256], index: 0, kind: input, shape index: {}]
  %s1 = inlined_call_operand.hbm [shape: f32[1,256], index: 1, kind: input, shape index: {}]
  %s2 = inlined_call_operand.vmem [shape: f32[1,256], index: 2, kind: input, shape index: {}]
  %s3 = inlined_call_operand.hbm [shape: f32[16,256], index: 3, kind: output, shape index: {}]
  %s4 = sld [smem:[#allocation0]]
  $region30: #{tpu_custom_call.1} parent=0
    _
  %s6 = ssub.s32 1, %s4
  %s7 = scalar_select 0, %s6, %s4
  $region1: #{tpu_custom_call.1} parent=0
    #allocation2 [shape = 'u8[16384]{0}', space=vmem, size = 0x4000, scoped, tag = 'input window, operand 0, single buffered']
    #allocation3 [shape = 's32[1]{0}', space=sflag, size = 0x4, scoped, tag = 'scoped memory for tpu_custom_call.1']
    #allocation4 [shape = 's32[1]{0}', space=sflag, size = 0x4, scoped, tag = 'scoped memory for tpu_custom_call.1']
    #allocation5 [shape = 'u8[1024]{0}', space=vmem, size = 0x400, scoped, tag = 'input window, operand 1, single buffered']
    #allocation6 [shape = 's32[1]{0}', space=sflag, size = 0x4, scoped, tag = 'scoped memory for tpu_custom_call.1']
    #allocation7 [shape = 'u8[16384]{0}', space=vmem, size = 0x4000, scoped, tag = 'output window, operand 0, single buffered']
    %8 = vsyncpa [#allocation3], 0
    %9 = vsyncpa [#allocation6], 0
    %10 = vsyncpa [#allocation4], 0
    // Predicated region
    $region2: #{tpu_custom_call.1} parent=1 // pred_check
      _
    $region3: #{tpu_custom_call.1} parent=1 // pred_check_branch
      %12 = sbr.rel (0) target = $region5
    $region4: #{tpu_custom_call.1} parent=1 // pred_region
      %s14 = ssub.s32 512, 512
      %15 = vsyncadd [#allocation3], %s14
      %s16 = sshll.u32 [#allocation2], 4
      %s17 = int_to_ptr.vmem [resolvable:$true] %s16
      %22 = dma.hbm_to_vmem [thread:$0]  %s0, 512, %s17, [#allocation3], 256, 256, 16
    $region5: #{tpu_custom_call.1} parent=1 // pred_fallthru
      _
    // Predicated region
    $region6: #{tpu_custom_call.1} parent=1 // pred_check
      _
    $region7: #{tpu_custom_call.1} parent=1 // pred_check_branch
      %24 = sbr.rel (0) target = $region9
    $region8: #{tpu_custom_call.1} parent=1 // pred_region
      %s26 = ssub.s32 32, 32
      %27 = vsyncadd [#allocation6], %s26
      %s29 = sshll.u32 [#allocation5], 4
      %s30 = int_to_ptr.vmem [resolvable:$true] %s29
      %32 = dma.hbm_to_vmem [thread:$0]  %s1, 32, %s30, [#allocation6]
    $region9: #{tpu_custom_call.1} parent=1 // pred_fallthru
      _
    // Predicated region
    $region10: #{tpu_custom_call.1} parent=1 // pred_check
      _
    $region11: #{tpu_custom_call.1} parent=1 // pred_check_branch
      %34 = sbr.rel (0) target = $region13
    $region12: #{tpu_custom_call.1} parent=1 // pred_region
      _
    $region13: #{tpu_custom_call.1} parent=1 // pred_fallthru
      _
    // Predicated region
    $region14: #{tpu_custom_call.1} parent=1 // pred_check
      _
    $region15: #{tpu_custom_call.1} parent=1 // pred_check_branch
      %36 = sbr.rel (0) target = $region17
    $region16: #{tpu_custom_call.1} parent=1 // pred_region
      %37 = dma.done [#allocation3], 512
    $region17: #{tpu_custom_call.1} parent=1 // pred_fallthru
      _
    // Predicated region
    $region18: #{tpu_custom_call.1} parent=1 // pred_check
      _
    $region19: #{tpu_custom_call.1} parent=1 // pred_check_branch
      %39 = sbr.rel (0) target = $region21
    $region20: #{tpu_custom_call.1} parent=1 // pred_region
      %40 = dma.done [#allocation6], 32
    $region21: #{tpu_custom_call.1} parent=1 // pred_fallthru
      _
    %v41 = vld [vmem:[#allocation5] sm:$0x3]
    %v42 = vld [vmem:[%s2] sm:$0x3]
    %v43 = vmul.f32 %v41, %v41
    %v44 = vadd.f32 %v43, 1e-08
    %v45 = vmul.f32 %v42, %v42
    %v46 = vadd.f32 %v45, 0.5
    %v47 = vld [vmem:[#allocation2] sm:$0xff]
    %v48 = vld [vmem:[#allocation2 + $0x8] sm:$0xff]
    %v49 = vld [vmem:[#allocation2 + $0x10] sm:$0xff]
    %v50 = vld [vmem:[#allocation2 + $0x18] sm:$0xff]
    %v51 = vand.u32 2147483647, %v47
    %v52 = vand.u32 2147483647, %v48
    %v53 = vand.u32 2147483647, %v49
    %v54 = vand.u32 2147483647, %v50
    %v56 = vlaneseq
    %v57 = vshrl.u32 %v56, 7
    %v58 = vsub.s32 0, %v57
    %v59 = vrot.slane %v44, %v58
    %v60 = vlaneseq
    %v61 = vshrl.u32 %v60, 7
    %v62 = vsub.s32 1, %v61
    %v63 = vrot.slane %v44, %v62
    %v66 = vmul.f32 %v59, %v51
    %v67 = vmul.f32 %v63, %v52
    %v68 = vmul.f32 %v59, %v53
    %v69 = vmul.f32 %v63, %v54
    %v71 = vlaneseq
    %v72 = vshrl.u32 %v71, 7
    %v73 = vsub.s32 0, %v72
    %v74 = vrot.slane %v46, %v73
    %v75 = vlaneseq
    %v76 = vshrl.u32 %v75, 7
    %v77 = vsub.s32 1, %v76
    %v78 = vrot.slane %v46, %v77
    %v81 = vadd.f32 %v66, %v74
    %v82 = vadd.f32 %v67, %v78
    %v83 = vadd.f32 %v68, %v74
    %v84 = vadd.f32 %v69, %v78
    %v85 = vmin.f32 %v81, 1.0
    %v86 = vmin.f32 %v82, 1.0
    %v87 = vmin.f32 %v83, 1.0
    %v88 = vmin.f32 %v84, 1.0
    %89 = vst [vmem:[#allocation7] sm:$0xff] %v85
    %90 = vst [vmem:[#allocation7 + $0x8] sm:$0xff] %v86
    %91 = vst [vmem:[#allocation7 + $0x10] sm:$0xff] %v87
    %92 = vst [vmem:[#allocation7 + $0x18] sm:$0xff] %v88
    // Predicated region
    $region22: #{tpu_custom_call.1} parent=1 // pred_check
      _
    $region23: #{tpu_custom_call.1} parent=1 // pred_check_branch
      %94 = sbr.rel (0) target = $region25
    $region24: #{tpu_custom_call.1} parent=1 // pred_region
      %s96 = ssub.s32 512, 512
      %97 = vsyncadd [#allocation4], %s96
      %s98 = sshll.u32 [#allocation7], 4
      %s99 = int_to_ptr.vmem [resolvable:$true] %s98
      %104 = dma.vmem_to_hbm [thread:$0]  %s99, 512, %s3, [#allocation4], 256, 256, 16
    $region25: #{tpu_custom_call.1} parent=1 // pred_fallthru
      _
    // Predicated region
    $region26: #{tpu_custom_call.1} parent=1 // pred_check
      _
    $region27: #{tpu_custom_call.1} parent=1 // pred_check_branch
      %106 = sbr.rel (0) target = $region29
    $region28: #{tpu_custom_call.1} parent=1 // pred_region
      %107 = dma.done [#allocation4], 512
    $region29: #{tpu_custom_call.1} parent=1 // pred_fallthru
      _
    %108 = vsyncpa [#allocation3], 1
    %109 = vsyncpa [#allocation6], 1
    %110 = vsyncpa [#allocation4], 1

</llo_original>
